<compile_context>
chip_gen: v7x
topology: tpu7x:2x2x1
jax: 0.10.0
libtpu: 0.0.40
codegen_flags: <defaults>
</compile_context>

<pallas_src>
import functools

import jax
import jax.numpy as jnp
from jax.experimental import pallas as pl
from jax.experimental.pallas import tpu as pltpu

_MIB = 1024 * 1024


# ---------------------------------------------------------------------------
# Small host-side helpers (run at trace time on static shapes).
# ---------------------------------------------------------------------------
def _cdiv(a, b):
    return -(-a // b)


def _round_up(x, m):
    return _cdiv(x, m) * m


def _balanced_tile(total, cap, align):
    """Largest tile <= ~cap (aligned) that splits `total` with minimal tail pad."""
    cap = max(align, (cap // align) * align)
    if total <= cap:
        return max(align, _round_up(total, align))
    n_tiles = _cdiv(total, cap)
    return max(align, _round_up(_cdiv(total, n_tiles), align))


def _vmem_limit_bytes():
    """Generation-aware VMEM limit: ~56 MiB on 64 MiB parts (v7x), up to
    ~100 MiB on 128 MiB parts (v5e/v6e)."""
    cap = 64 * _MIB  # conservative fallback = v7x per-TC VMEM
    try:
        info = pltpu.get_tpu_info()
        c = int(getattr(info, "vmem_capacity_bytes", 0))
        if c > 0:
            cap = c
    except Exception:
        pass
    return max(32 * _MIB, min(cap - 8 * _MIB, 100 * _MIB))


def _select_plan(T, Hp, Pp, comp_isz, out_isz, vmem_budget, t_align):
    """Return (tile_t, tile_p).  tile_p == Pp means weights stay VMEM-resident."""
    # --- Case 1: both padded weight matrices resident in VMEM (single DMA). ---
    w_bytes = 2 * Hp * Pp * comp_isz
    if w_bytes <= vmem_budget // 2:
        per_row = (2 * Hp * comp_isz          # x tile, double-buffered
                   + 2 * Hp * out_isz         # out tile, double-buffered
                   + Pp * 4 + Pp * comp_isz)  # f32 h intermediate + cast copy
        cap = (vmem_budget - w_bytes) // per_row
        cap = min(max(t_align, cap), 1024)
        return _balanced_tile(T, cap, t_align), Pp

    # --- Case 2: chunk the pf_dim (k reduction axis), weights double-buffered. ---
    tile_p = min(512, Pp)
    while tile_p > 128 and (Pp % tile_p != 0
                            or 4 * Hp * tile_p * comp_isz > vmem_budget // 2):
        tile_p -= 128
    tile_p = max(128, tile_p)
    w_chunk_bytes = 4 * Hp * tile_p * comp_isz          # w1 + w2 chunks, 2-deep
    per_row = (2 * Hp * comp_isz + 2 * Hp * out_isz
               + tile_p * 4 + tile_p * comp_isz
               + (Hp * 4 if out_isz != 4 else 0))       # f32 acc scratch if needed
    cap = (vmem_budget - w_chunk_bytes) // per_row
    cap = min(max(t_align, cap), 1024)
    return _balanced_tile(T, cap, t_align), tile_p


# ---------------------------------------------------------------------------
# Kernels.
# ---------------------------------------------------------------------------
def _ffn_kernel_resident(x_ref, w1_ref, w2_ref, b_ref, o_ref):
    # Full pf_dim in VMEM: one shot per token tile, no reduction axis.
    h = jnp.dot(x_ref[...], w1_ref[...], preferred_element_type=jnp.float32)
    y = jnp.dot(h.astype(w2_ref.dtype), w2_ref[...],
                preferred_element_type=jnp.float32)
    o_ref[...] = (y + b_ref[...]).astype(o_ref.dtype)


def _ffn_kernel_reduce_f32out(x_ref, w1_ref, w2_ref, b_ref, o_ref):
    # pf_dim chunked; f32 output accumulates directly into the VMEM-resident
    # output block (constant index map along k) — no scratch, no final copy.
    k = pl.program_id(1)

    @pl.when(k == 0)
    def _():
        o_ref[...] = jnp.zeros_like(o_ref) + b_ref[...]

    h = jnp.dot(x_ref[...], w1_ref[...], preferred_element_type=jnp.float32)
    o_ref[...] += jnp.dot(h.astype(w2_ref.dtype), w2_ref[...],
                          preferred_element_type=jnp.float32)


def _ffn_kernel_reduce_scratch(x_ref, w1_ref, w2_ref, b_ref, o_ref, acc_ref):
    # pf_dim chunked; non-f32 output needs an f32 accumulator scratch.
    k = pl.program_id(1)

    @pl.when(k == 0)
    def _():
        acc_ref[...] = jnp.zeros_like(acc_ref) + b_ref[...]

    h = jnp.dot(x_ref[...], w1_ref[...], preferred_element_type=jnp.float32)
    acc_ref[...] += jnp.dot(h.astype(w2_ref.dtype), w2_ref[...],
                            preferred_element_type=jnp.float32)

    @pl.when(k == pl.num_programs(1) - 1)
    def _():
        o_ref[...] = acc_ref[...].astype(o_ref.dtype)


# ---------------------------------------------------------------------------
# Public API.
# ---------------------------------------------------------------------------
def prepare_params(w1, b1, w2, b2, *, compute_dtype=None):
    """One-time (out of the hot path) padding / casting of the FFN parameters.

    w1: [H, P] (fc_1.weight transposed to in-major), b1: [P]
    w2: [P, H] (fc_2.weight transposed to in-major), b2: [H]
    Returns (w1p, w2p, b12p):
      w1p [Hp, Pp], w2p [Pp, Hp] in `compute_dtype` (default: w1.dtype),
      b12p [1, Hp] f32 combined bias  b1 @ W2 + b2.
    """
    H, P = w1.shape
    Hp = _round_up(H, 128)
    Pp = _round_up(P, 128)
    cd = jnp.dtype(compute_dtype) if compute_dtype is not None else jnp.dtype(w1.dtype)

    # Exact f32 bias fold: (x@W1 + b1)@W2 + b2 = x@W1@W2 + (b1@W2 + b2)
    b12 = (b1.astype(jnp.float32) @ w2.astype(jnp.float32)
           + b2.astype(jnp.float32)).reshape(1, H)

    w1p = jnp.pad(w1, ((0, Hp - H), (0, Pp - P))).astype(cd)
    w2p = jnp.pad(w2, ((0, Pp - P), (0, Hp - H))).astype(cd)
    b12p = jnp.pad(b12, ((0, 0), (0, Hp - H)))
    return w1p, w2p, b12p


@jax.jit
def positionwise_feedforward(x, w1p, w2p, b12p):
    """y = fc_2(fc_1(x)).  x: [..., H]; params from prepare_params."""
    orig_shape = x.shape
    H = orig_shape[-1]
    out_dtype = jnp.dtype(x.dtype)
    comp_dtype = jnp.dtype(w1p.dtype)
    Hp, Pp = w1p.shape

    T = 1
    for d in orig_shape[:-1]:
        T *= d

    comp_isz = comp_dtype.itemsize
    out_isz = out_dtype.itemsize
    t_align = max(8, 32 // comp_isz)          # 8 rows f32, 16 rows bf16, ...

    vmem_limit = _vmem_limit_bytes()
    vmem_budget = vmem_limit * 3 // 4         # headroom for Mosaic internals
    tile_t, tile_p = _select_plan(T, Hp, Pp, comp_isz, out_isz, vmem_budget, t_align)

    Tp = _round_up(T, tile_t)
    nt = Tp // tile_t
    nk = Pp // tile_p

    x2d = x.reshape(T, H).astype(comp_dtype)
    if Tp != T or Hp != H:
        x2d = jnp.pad(x2d, ((0, Tp - T), (0, Hp - H)))

    if nk == 1:
        # Weights fully VMEM-resident: 1-D grid over token tiles only.
        grid = (nt,)
        in_specs = [
            pl.BlockSpec((tile_t, Hp), lambda i: (i, 0)),   # x tile
            pl.BlockSpec((Hp, Pp), lambda i: (0, 0)),       # W1 (resident)
            pl.BlockSpec((Pp, Hp), lambda i: (0, 0)),       # W2 (resident)
            pl.BlockSpec((1, Hp), lambda i: (0, 0)),        # combined bias
        ]
        out_spec = pl.BlockSpec((tile_t, Hp), lambda i: (i, 0))
        scratch = []
        kernel = _ffn_kernel_resident
        dim_sem = ("parallel",)
        weight_reads = 1
    else:
        grid = (nt, nk)
        in_specs = [
            pl.BlockSpec((tile_t, Hp), lambda i, k: (i, 0)),   # x tile
            pl.BlockSpec((Hp, tile_p), lambda i, k: (0, k)),   # W1 chunk
            pl.BlockSpec((tile_p, Hp), lambda i, k: (k, 0)),   # W2 chunk
            pl.BlockSpec((1, Hp), lambda i, k: (0, 0)),        # combined bias
        ]
        out_spec = pl.BlockSpec((tile_t, Hp), lambda i, k: (i, 0))
        if out_dtype == jnp.dtype(jnp.float32):
            scratch = []
            kernel = _ffn_kernel_reduce_f32out
        else:
            scratch = [pltpu.VMEM((tile_t, Hp), jnp.float32)]
            kernel = _ffn_kernel_reduce_scratch
        dim_sem = ("parallel", "arbitrary")
        weight_reads = nt                      # chunks re-streamed per token tile

    flops = 4 * Tp * Hp * Pp                   # two matmuls, 2*M*N*K each
    bytes_accessed = (Tp * Hp * (comp_isz + out_isz)
                      + weight_reads * (w1p.size + w2p.size) * comp_isz
                      + b12p.size * 4)

    out2d = pl.pallas_call(
        kernel,
        out_shape=jax.ShapeDtypeStruct((Tp, Hp), out_dtype),
        grid_spec=pltpu.PrefetchScalarGridSpec(
            num_scalar_prefetch=0,
            grid=grid,
            in_specs=in_specs,
            out_specs=out_spec,
            scratch_shapes=scratch,
        ),
        compiler_params=pltpu.CompilerParams(
            dimension_semantics=dim_sem,
            vmem_limit_bytes=int(vmem_limit),
        ),
        cost_estimate=pl.CostEstimate(
            flops=int(flops), transcendentals=0,
            bytes_accessed=int(bytes_accessed)),
    )(x2d, w1p, w2p, b12p)

    if Tp != T or Hp != H:
        out2d = out2d[:T, :H]
    return out2d.reshape(orig_shape)


def init_params(key, hidden_dim, pf_dim, dtype=jnp.float32):
    """nn.Linear-style init: uniform(-1/sqrt(fan_in), 1/sqrt(fan_in)).
    Weights stored pre-transposed as [in_features, out_features]."""
    k1, k2, k3, k4 = jax.random.split(key, 4)
    bound1 = 1.0 / (hidden_dim ** 0.5)
    bound2 = 1.0 / (pf_dim ** 0.5)
    w1 = jax.random.uniform(k1, (hidden_dim, pf_dim), dtype, -bound1, bound1)
    b1 = jax.random.uniform(k2, (pf_dim,), dtype, -bound1, bound1)
    w2 = jax.random.uniform(k3, (pf_dim, hidden_dim), dtype, -bound2, bound2)
    b2 = jax.random.uniform(k4, (hidden_dim,), dtype, -bound2, bound2)
    return w1, b1, w2, b2


if __name__ == "__main__":
    B, S, H, P = 2, 8, 32, 64  # batch, seq, hidden_dim, pf_dim
    key = jax.random.PRNGKey(0)
    kx, kp = jax.random.split(key)

    x = jax.random.normal(kx, (B, S, H), jnp.float32)
    w1, b1, w2, b2 = init_params(kp, H, P)

    # Plain-JAX reference (same math as the PyTorch forward).
    ref = ((x.reshape(-1, H) @ w1 + b1) @ w2 + b2).reshape(B, S, H)

    # f32 compute path (bit-tight vs. the reference).
    params_f32 = prepare_params(w1, b1, w2, b2)
    out_f32 = jax.block_until_ready(positionwise_feedforward(x, *params_f32))
    assert out_f32.shape == (B, S, H)
    assert jnp.allclose(out_f32, ref, atol=1e-4, rtol=1e-4)

    # bf16 compute path (production configuration for v5e/v6e/v7x MXUs;
    # f32 accumulation, f32 output).
    params_bf16 = prepare_params(w1, b1, w2, b2, compute_dtype=jnp.bfloat16)
    out_bf16 = jax.block_until_ready(positionwise_feedforward(x, *params_bf16))
    assert out_bf16.shape == (B, S, H)
    assert out_bf16.dtype == x.dtype
    assert jnp.allclose(out_bf16, ref, atol=5e-2, rtol=5e-2)

    print("KERNEL_OK")
</pallas_src>

<mosaic_0001>
module attributes {stable_mosaic.version = 11 : i64} {
  func.func @_ffn_kernel_resident(%arg0: i32, %arg1: memref<16x128xf32, #tpu.memory_space<vmem>>, %arg2: memref<128x128xf32, #tpu.memory_space<vmem>>, %arg3: memref<128x128xf32, #tpu.memory_space<vmem>>, %arg4: memref<1x128xf32, #tpu.memory_space<vmem>>, %arg5: memref<16x128xf32, #tpu.memory_space<vmem>>) attributes {dimension_semantics = [#tpu.dimension_semantics<parallel>], iteration_bounds = array<i64: 1>, scalar_prefetch = 0 : i64, scratch_operands = 0 : i64, tpu.core_type = #tpu.core_type<tc>, window_params = [{transform_indices = @transform_0, window_bounds = array<i64: 16, 128>}, {pipeline_mode = #tpu.pipeline_mode<synchronous>, transform_indices = @transform_1, window_bounds = array<i64: 128, 128>}, {pipeline_mode = #tpu.pipeline_mode<synchronous>, transform_indices = @transform_2, window_bounds = array<i64: 128, 128>}, {pipeline_mode = #tpu.pipeline_mode<synchronous>, transform_indices = @transform_3, window_bounds = array<i64: 1, 128>}, {transform_indices = @transform_4, window_bounds = array<i64: 16, 128>}]} {
    %c0 = arith.constant 0 : index
    %c0_0 = arith.constant 0 : index
    %0 = vector.load %arg1[%c0, %c0_0] : memref<16x128xf32, #tpu.memory_space<vmem>>, vector<16x128xf32>
    %c0_1 = arith.constant 0 : index
    %c0_2 = arith.constant 0 : index
    %1 = vector.load %arg2[%c0_1, %c0_2] : memref<128x128xf32, #tpu.memory_space<vmem>>, vector<128x128xf32>
    %cst = arith.constant dense<0.000000e+00> : vector<16x128xf32>
    %2 = tpu.matmul %0, %1, %cst {dimension_numbers = #tpu.dot_dimension_numbers<[1], [0], [0], [1], [0, 0, 1, 1], [], []>} : vector<16x128xf32>, vector<128x128xf32>, vector<16x128xf32> -> vector<16x128xf32>
    %c0_3 = arith.constant 0 : index
    %c0_4 = arith.constant 0 : index
    %3 = vector.load %arg3[%c0_3, %c0_4] : memref<128x128xf32, #tpu.memory_space<vmem>>, vector<128x128xf32>
    %cst_5 = arith.constant dense<0.000000e+00> : vector<16x128xf32>
    %4 = tpu.matmul %2, %3, %cst_5 {dimension_numbers = #tpu.dot_dimension_numbers<[1], [0], [0], [1], [0, 0, 1, 1], [], []>} : vector<16x128xf32>, vector<128x128xf32>, vector<16x128xf32> -> vector<16x128xf32>
    %c0_6 = arith.constant 0 : index
    %c0_7 = arith.constant 0 : index
    %5 = vector.load %arg4[%c0_6, %c0_7] : memref<1x128xf32, #tpu.memory_space<vmem>>, vector<1x128xf32>
    %6 = vector.broadcast %5 : vector<1x128xf32> to vector<16x128xf32>
    %7 = arith.addf %4, %6 : vector<16x128xf32>
    %c0_8 = arith.constant 0 : index
    %c0_9 = arith.constant 0 : index
    %8 = vector.load %arg5[%c0_8, %c0_9] : memref<16x128xf32, #tpu.memory_space<vmem>>, vector<16x128xf32>
    tpu.vector_store %arg5[%c0_8, %c0_9], %7 {strides = array<i32>} : memref<16x128xf32, #tpu.memory_space<vmem>>, vector<16x128xf32>,
    return
  }
  func.func @transform_0(%arg0: i32) -> (i32, i32) {
    %c0_i32 = arith.constant 0 : i32
    %c0_i32_0 = arith.constant 0 : i32
    return %arg0, %c0_i32 : i32, i32
  }
  func.func @transform_1(%arg0: i32) -> (i32, i32) {
    %c0_i32 = arith.constant 0 : i32
    %c0_i32_0 = arith.constant 0 : i32
    %c0_i32_1 = arith.constant 0 : i32
    return %c0_i32, %c0_i32_0 : i32, i32
  }
  func.func @transform_2(%arg0: i32) -> (i32, i32) {
    %c0_i32 = arith.constant 0 : i32
    %c0_i32_0 = arith.constant 0 : i32
    %c0_i32_1 = arith.constant 0 : i32
    return %c0_i32, %c0_i32_0 : i32, i32
  }
  func.func @transform_3(%arg0: i32) -> (i32, i32) {
    %c0_i32 = arith.constant 0 : i32
    %c0_i32_0 = arith.constant 0 : i32
    %c0_i32_1 = arith.constant 0 : i32
    return %c0_i32, %c0_i32_0 : i32, i32
  }
  func.func @transform_4(%arg0: i32) -> (i32, i32) {
    %c0_i32 = arith.constant 0 : i32
    %c0_i32_0 = arith.constant 0 : i32
    return %arg0, %c0_i32 : i32, i32
  }
}

</mosaic_0001>

<llo_original>
// kernel: positionwise_feedforward.1
$region0: #{positionwise_feedforward.1}
  #allocation0 [shape = 'u32[]', space=smem, size = 0x4, offset = 0x4, fixed_abs, tag = 'smem constant byte address 0x4 - core index']
  #allocation1 [shape = 'u32[144,128]{1,0:T(1,128)}', space=vmem, size = 0x12000, scoped, tag = 'internal scratch']
  %s0 = inlined_call_operand.vmem [shape: f32[16,128], index: 0, kind: input, shape index: {}]
  %s1 = inlined_call_operand.hbm [shape: f32[128,128], index: 1, kind: input, shape index: {}]
  %s2 = inlined_call_operand.hbm [shape: f32[128,128], index: 2, kind: input, shape index: {}]
  %s3 = inlined_call_operand.vmem [shape: f32[1,128], index: 3, kind: input, shape index: {}]
  %s4 = inlined_call_operand.vmem [shape: f32[16,128], index: 4, kind: output, shape index: {}]
  %s5 = sld [smem:[#allocation0]]
  $region34: #{positionwise_feedforward.1} parent=0
    _
  %s7 = ssub.s32 1, %s5
  %s8 = scalar_select 0, %s7, %s5
  $region1: #{positionwise_feedforward.1} parent=0
    #allocation2 [shape = 'u8[65536]{0}', space=vmem, size = 0x10000, scoped, tag = 'input window, operand 1, single buffered']
    #allocation3 [shape = 's32[1]{0}', space=sflag, size = 0x4, scoped, tag = 'scoped memory for positionwise_feedforward.1']
    #allocation4 [shape = 'u8[65536]{0}', space=vmem, size = 0x10000, scoped, tag = 'input window, operand 2, single buffered']
    #allocation5 [shape = 's32[1]{0}', space=sflag, size = 0x4, scoped, tag = 'scoped memory for positionwise_feedforward.1']
    %9 = vsyncpa [#allocation3], 0
    %10 = vsyncpa [#allocation5], 0
    // Predicated region
    $region2: #{positionwise_feedforward.1} parent=1 // pred_check
      _
    $region3: #{positionwise_feedforward.1} parent=1 // pred_check_branch
      %12 = sbr.rel (0) target = $region5
    $region4: #{positionwise_feedforward.1} parent=1 // pred_region
      _
    $region5: #{positionwise_feedforward.1} parent=1 // pred_fallthru
      _
    // Predicated region
    $region6: #{positionwise_feedforward.1} parent=1 // pred_check
      _
    $region7: #{positionwise_feedforward.1} parent=1 // pred_check_branch
      %14 = sbr.rel (0) target = $region9
    $region8: #{positionwise_feedforward.1} parent=1 // pred_region
      %s16 = ssub.s32 2048, 2048
      %17 = vsyncadd [#allocation3], %s16
      %s18 = sshll.u32 [#allocation2], 4
      %s19 = int_to_ptr.vmem [resolvable:$true] %s18
      %24 = dma.hbm_to_vmem [thread:$0]  %s1, 2048, %s19, [#allocation3], 128, 128, 8
    $region9: #{positionwise_feedforward.1} parent=1 // pred_fallthru
      _
    // Predicated region
    $region10: #{positionwise_feedforward.1} parent=1 // pred_check
      _
    $region11: #{positionwise_feedforward.1} parent=1 // pred_check_branch
      %26 = sbr.rel (0) target = $region13
    $region12: #{positionwise_feedforward.1} parent=1 // pred_region
      %s28 = ssub.s32 2048, 2048
      %29 = vsyncadd [#allocation5], %s28
      %s30 = sshll.u32 [#allocation4], 4
      %s31 = int_to_ptr.vmem [resolvable:$true] %s30
      %36 = dma.hbm_to_vmem [thread:$0]  %s2, 2048, %s31, [#allocation5], 128, 128, 8
    $region13: #{positionwise_feedforward.1} parent=1 // pred_fallthru
      _
    // Predicated region
    $region14: #{positionwise_feedforward.1} parent=1 // pred_check
      _
    $region15: #{positionwise_feedforward.1} parent=1 // pred_check_branch
      %38 = sbr.rel (0) target = $region17
    $region16: #{positionwise_feedforward.1} parent=1 // pred_region
      _
    $region17: #{positionwise_feedforward.1} parent=1 // pred_fallthru
      _
    // Predicated region
    $region18: #{positionwise_feedforward.1} parent=1 // pred_check
      _
    $region19: #{positionwise_feedforward.1} parent=1 // pred_check_branch
      %40 = sbr.rel (0) target = $region21
    $region20: #{positionwise_feedforward.1} parent=1 // pred_region
      %41 = dma.done [#allocation3], 2048
    $region21: #{positionwise_feedforward.1} parent=1 // pred_fallthru
      _
    // Predicated region
    $region22: #{positionwise_feedforward.1} parent=1 // pred_check
      _
    $region23: #{positionwise_feedforward.1} parent=1 // pred_check_branch
      %43 = sbr.rel (0) target = $region25
    $region24: #{positionwise_feedforward.1} parent=1 // pred_region
      %44 = dma.done [#allocation5], 2048
    $region25: #{positionwise_feedforward.1} parent=1 // pred_fallthru
      _
    %v45 = vld [vmem:[%s0] sm:$0xff]
    %v46 = vld [vmem:[%s0 + $0x8] sm:$0xff]
    %v47 = vld [vmem:[#allocation2] sm:$0xff]
    %v48 = vld [vmem:[#allocation2 + $0x8] sm:$0xff]
    %v49 = vld [vmem:[#allocation2 + $0x10] sm:$0xff]
    %v50 = vld [vmem:[#allocation2 + $0x18] sm:$0xff]
    %v51 = vld [vmem:[#allocation2 + $0x20] sm:$0xff]
    %v52 = vld [vmem:[#allocation2 + $0x28] sm:$0xff]
    %v53 = vld [vmem:[#allocation2 + $0x30] sm:$0xff]
    %v54 = vld [vmem:[#allocation2 + $0x38] sm:$0xff]
    %v55 = vld [vmem:[#allocation2 + $0x40] sm:$0xff]
    %v56 = vld [vmem:[#allocation2 + $0x48] sm:$0xff]
    %v57 = vld [vmem:[#allocation2 + $0x50] sm:$0xff]
    %v58 = vld [vmem:[#allocation2 + $0x58] sm:$0xff]
    %v59 = vld [vmem:[#allocation2 + $0x60] sm:$0xff]
    %v60 = vld [vmem:[#allocation2 + $0x68] sm:$0xff]
    %v61 = vld [vmem:[#allocation2 + $0x70] sm:$0xff]
    %v62 = vld [vmem:[#allocation2 + $0x78] sm:$0xff]
    %63 = vmatprep.subr.mxu0 0.0
    %64 = vmatpush1.msra.mxu0 %v47
    %65 = vmatprep.subr.mxu0 0.0
    %66 = vmatpush1.msra.mxu0 %v48
    %67 = vmatprep.subr.mxu0 0.0
    %68 = vmatpush1.msra.mxu0 %v49
    %69 = vmatprep.subr.mxu0 0.0
    %70 = vmatpush1.msra.mxu0 %v50
    %71 = vmatprep.subr.mxu0 0.0
    %72 = vmatpush1.msra.mxu0 %v51
    %73 = vmatprep.subr.mxu0 0.0
    %74 = vmatpush1.msra.mxu0 %v52
    %75 = vmatprep.subr.mxu0 0.0
    %76 = vmatpush1.msra.mxu0 %v53
    %77 = vmatprep.subr.mxu0 0.0
    %78 = vmatpush1.msra.mxu0 %v54
    %79 = vmatprep.subr.mxu0 0.0
    %80 = vmatpush1.msra.mxu0 %v55
    %81 = vmatprep.subr.mxu0 0.0
    %82 = vmatpush1.msra.mxu0 %v56
    %83 = vmatprep.subr.mxu0 0.0
    %84 = vmatpush1.msra.mxu0 %v57
    %85 = vmatprep.subr.mxu0 0.0
    %86 = vmatpush1.msra.mxu0 %v58
    %87 = vmatprep.subr.mxu0 0.0
    %88 = vmatpush1.msra.mxu0 %v59
    %89 = vmatprep.subr.mxu0 0.0
    %90 = vmatpush1.msra.mxu0 %v60
    %91 = vmatprep.subr.mxu0 0.0
    %92 = vmatpush1.msra.mxu0 %v61
    %93 = vmatprep.subr.mxu0 0.0
    %94 = vmatpush1.msra.mxu0 %v62
    %95 = vmatprep.subr.mxu0 0.0
    %96 = vmatpush1.msra.mxu0 0.0
    %97 = vmatprep.subr.mxu0 0.0
    %98 = vmatpush1.msra.mxu0 0.0
    %99 = vmatprep.subr.mxu0 0.0
    %100 = vmatpush1.msra.mxu0 0.0
    %101 = vmatprep.subr.mxu0 0.0
    %102 = vmatpush1.msra.mxu0 0.0
    %103 = vmatprep.subr.mxu0 0.0
    %104 = vmatpush1.msra.mxu0 0.0
    %105 = vmatprep.subr.mxu0 0.0
    %106 = vmatpush1.msra.mxu0 0.0
    %107 = vmatprep.subr.mxu0 0.0
    %108 = vmatpush1.msra.mxu0 0.0
    %109 = vmatprep.subr.mxu0 0.0
    %110 = vmatpush1.msra.mxu0 0.0
    %111 = vmatprep.subr.mxu0 0.0
    %112 = vmatpush1.msra.mxu0 0.0
    %113 = vmatprep.subr.mxu0 0.0
    %114 = vmatpush1.msra.mxu0 0.0
    %115 = vmatprep.subr.mxu0 0.0
    %116 = vmatpush1.msra.mxu0 0.0
    %117 = vmatprep.subr.mxu0 0.0
    %118 = vmatpush1.msra.mxu0 0.0
    %119 = vmatprep.subr.mxu0 0.0
    %120 = vmatpush1.msra.mxu0 0.0
    %121 = vmatprep.subr.mxu0 0.0
    %122 = vmatpush1.msra.mxu0 0.0
    %123 = vmatprep.subr.mxu0 0.0
    %124 = vmatpush1.msra.mxu0 0.0
    %125 = vmatprep.subr.mxu0 0.0
    %126 = vmatpush1.msra.mxu0 0.0
    %127 = vmatprep.mubr.f32.mxu0 0.0
    %128 = vmatmul.mubr.f32.gmra.mrb[0].mxu0 %v45
    %v129 = vpop.f32.mrb[0].mxu0
    %v130 = vadd.f32 0.0, %v129
    %v131 = vpop.f32.mrb[0].mxu0
    %132 = vmatprep.mubr.f32.mxu0 0.0
    %133 = vmatmul.mubr.f32.gmra.mrb[0].mxu0 %v46
    %v134 = vpop.f32.mrb[0].mxu0
    %v135 = vadd.f32 0.0, %v134
    %v136 = vpop.f32.mrb[0].mxu0
    %137 = vdwg.mxu0
    %v138 = vld [vmem:[#allocation4] sm:$0xff]
    %v139 = vld [vmem:[#allocation4 + $0x8] sm:$0xff]
    %v140 = vld [vmem:[#allocation4 + $0x10] sm:$0xff]
    %v141 = vld [vmem:[#allocation4 + $0x18] sm:$0xff]
    %v142 = vld [vmem:[#allocation4 + $0x20] sm:$0xff]
    %v143 = vld [vmem:[#allocation4 + $0x28] sm:$0xff]
    %v144 = vld [vmem:[#allocation4 + $0x30] sm:$0xff]
    %v145 = vld [vmem:[#allocation4 + $0x38] sm:$0xff]
    %v146 = vld [vmem:[#allocation4 + $0x40] sm:$0xff]
    %v147 = vld [vmem:[#allocation4 + $0x48] sm:$0xff]
    %v148 = vld [vmem:[#allocation4 + $0x50] sm:$0xff]
    %v149 = vld [vmem:[#allocation4 + $0x58] sm:$0xff]
    %v150 = vld [vmem:[#allocation4 + $0x60] sm:$0xff]
    %v151 = vld [vmem:[#allocation4 + $0x68] sm:$0xff]
    %v152 = vld [vmem:[#allocation4 + $0x70] sm:$0xff]
    %v153 = vld [vmem:[#allocation4 + $0x78] sm:$0xff]
    %v154 = vld [vmem:[%s3] sm:$0x1]
    %v156 = vlaneseq
    %v157 = vshrl.u32 %v156, 7
    %v158 = vsub.s32 0, %v157
    %v159 = vrot.slane %v154, %v158
    %161 = vmatprep.subr.mxu0 0.0
    %162 = vmatpush1.msra.mxu0 %v138
    %163 = vmatprep.subr.mxu0 0.0
    %164 = vmatpush1.msra.mxu0 %v139
    %165 = vmatprep.subr.mxu0 0.0
    %166 = vmatpush1.msra.mxu0 %v140
    %167 = vmatprep.subr.mxu0 0.0
    %168 = vmatpush1.msra.mxu0 %v141
    %169 = vmatprep.subr.mxu0 0.0
    %170 = vmatpush1.msra.mxu0 %v142
    %171 = vmatprep.subr.mxu0 0.0
    %172 = vmatpush1.msra.mxu0 %v143
    %173 = vmatprep.subr.mxu0 0.0
    %174 = vmatpush1.msra.mxu0 %v144
    %175 = vmatprep.subr.mxu0 0.0
    %176 = vmatpush1.msra.mxu0 %v145
    %177 = vmatprep.subr.mxu0 0.0
    %178 = vmatpush1.msra.mxu0 %v146
    %179 = vmatprep.subr.mxu0 0.0
    %180 = vmatpush1.msra.mxu0 %v147
    %181 = vmatprep.subr.mxu0 0.0
    %182 = vmatpush1.msra.mxu0 %v148
    %183 = vmatprep.subr.mxu0 0.0
    %184 = vmatpush1.msra.mxu0 %v149
    %185 = vmatprep.subr.mxu0 0.0
    %186 = vmatpush1.msra.mxu0 %v150
    %187 = vmatprep.subr.mxu0 0.0
    %188 = vmatpush1.msra.mxu0 %v151
    %189 = vmatprep.subr.mxu0 0.0
    %190 = vmatpush1.msra.mxu0 %v152
    %191 = vmatprep.subr.mxu0 0.0
    %192 = vmatpush1.msra.mxu0 %v153
    %193 = vmatprep.subr.mxu0 0.0
    %194 = vmatpush1.msra.mxu0 0.0
    %195 = vmatprep.subr.mxu0 0.0
    %196 = vmatpush1.msra.mxu0 0.0
    %197 = vmatprep.subr.mxu0 0.0
    %198 = vmatpush1.msra.mxu0 0.0
    %199 = vmatprep.subr.mxu0 0.0
    %200 = vmatpush1.msra.mxu0 0.0
    %201 = vmatprep.subr.mxu0 0.0
    %202 = vmatpush1.msra.mxu0 0.0
    %203 = vmatprep.subr.mxu0 0.0
    %204 = vmatpush1.msra.mxu0 0.0
    %205 = vmatprep.subr.mxu0 0.0
    %206 = vmatpush1.msra.mxu0 0.0
    %207 = vmatprep.subr.mxu0 0.0
    %208 = vmatpush1.msra.mxu0 0.0
    %209 = vmatprep.subr.mxu0 0.0
    %210 = vmatpush1.msra.mxu0 0.0
    %211 = vmatprep.subr.mxu0 0.0
    %212 = vmatpush1.msra.mxu0 0.0
    %213 = vmatprep.subr.mxu0 0.0
    %214 = vmatpush1.msra.mxu0 0.0
    %215 = vmatprep.subr.mxu0 0.0
    %216 = vmatpush1.msra.mxu0 0.0
    %217 = vmatprep.subr.mxu0 0.0
    %218 = vmatpush1.msra.mxu0 0.0
    %219 = vmatprep.subr.mxu0 0.0
    %220 = vmatpush1.msra.mxu0 0.0
    %221 = vmatprep.subr.mxu0 0.0
    %222 = vmatpush1.msra.mxu0 0.0
    %223 = vmatprep.subr.mxu0 0.0
    %224 = vmatpush1.msra.mxu0 0.0
    %225 = vmatprep.mubr.f32.mxu0 0.0
    %226 = vmatmul.mubr.f32.gmra.mrb[0].mxu0 %v130
    %v227 = vpop.f32.mrb[0].mxu0
    %v228 = vadd.f32 %v159, %v227
    %v229 = vpop.f32.mrb[0].mxu0
    %230 = vmatprep.mubr.f32.mxu0 0.0
    %231 = vmatmul.mubr.f32.gmra.mrb[0].mxu0 %v135
    %v232 = vpop.f32.mrb[0].mxu0
    %v233 = vadd.f32 %v159, %v232
    %v234 = vpop.f32.mrb[0].mxu0
    %235 = vdwg.mxu0
    %236 = vst [vmem:[%s4] sm:$0xff] %v228
    %237 = vst [vmem:[%s4 + $0x8] sm:$0xff] %v233
    // Predicated region
    $region26: #{positionwise_feedforward.1} parent=1 // pred_check
      _
    $region27: #{positionwise_feedforward.1} parent=1 // pred_check_branch
      %239 = sbr.rel (0) target = $region29
    $region28: #{positionwise_feedforward.1} parent=1 // pred_region
      _
    $region29: #{positionwise_feedforward.1} parent=1 // pred_fallthru
      _
    // Predicated region
    $region30: #{positionwise_feedforward.1} parent=1 // pred_check
      _
    $region31: #{positionwise_feedforward.1} parent=1 // pred_check_branch
      %241 = sbr.rel (0) target = $region33
    $region32: #{positionwise_feedforward.1} parent=1 // pred_region
      _
    $region33: #{positionwise_feedforward.1} parent=1 // pred_fallthru
      _
    %242 = vsyncpa [#allocation3], 1
    %243 = vsyncpa [#allocation5], 1

</llo_original>
